<compile_context>
chip_gen: v5e
topology: v5e:2x2
jax: 0.10.0
libtpu: 0.0.40
codegen_flags: <defaults>
</compile_context>

<pallas_src>
import functools

import jax
import jax.numpy as jnp
from jax import lax
from jax.experimental import pallas as pl
from jax.experimental.pallas import tpu as pltpu

VOCAB = 5            # {0:'A', 1:'C', 2:'G', 3:'T', 4:'N'}
HIDDEN = 32
NUM_CLASSES = 2
MAX_TILE_S = 131072  # tokens per seq tile; 2 x ~1.25 MiB bf16 x-buffers + 2.5 MiB acc


def _round_up(x, m):
    return (x + m - 1) // m * m


def _wrapper_kernel(x_ref, emb_ref, w_ref, bias_ref, out_ref, acc_ref, *,
                    seq_len, pad_count):
    """grid = (batch, seq_tiles): argmax-count -> (last tile) pool -> linear -> softmax.

    x_ref:    [C, ROWS, 128] bf16   lane-dense (possibly soft) one-hot tile
    emb_ref:  [C, H]                token embedding table (VMEM-resident HF stand-in)
    w_ref:    [H, NC]               classifier weight (VMEM-resident)
    bias_ref: [1, NC]               classifier bias (VMEM-resident)
    out_ref:  [1, NC]               softmax probabilities for this batch element
    acc_ref:  [C, FOLD, 128] f32    per-channel argmax-count accumulator (VMEM scratch)
    """
    k = pl.program_id(1)
    n_ch, rows, lanes = x_ref.shape
    fold_rows = acc_ref.shape[1]

    @pl.when(k == 0)
    def _():
        acc_ref[...] = jnp.zeros_like(acc_ref)

    # Unrolled first-match argmax over the (tiny, static) channel axis: running
    # prefix maxes + "attains the global max AND no earlier channel did" selects.
    # All hot-loop work is dense [ROWS,128] VALU ops; no sublane/XLU traffic.
    slabs = [x_ref[c].astype(jnp.float32) for c in range(n_ch)]
    prefs = [slabs[0]]
    for c in range(1, n_ch):
        prefs.append(jnp.maximum(prefs[-1], slabs[c]))
    m = prefs[-1]                                        # per-token global max
    for c in range(n_ch):
        if c == 0:
            hit = slabs[0] >= m                          # channel 0 wins all ties
        else:
            hit = jnp.logical_and(slabs[c] >= m, prefs[c - 1] < m)
        hit_f32 = hit.astype(jnp.float32)
        if rows > fold_rows:
            # Fold vreg rows (pure vector adds) before touching the accumulator so
            # the hot loop issues only one accumulator load/store per channel.
            hit_f32 = jnp.sum(
                hit_f32.reshape(rows // fold_rows, fold_rows, lanes), axis=0)
        acc_ref[c] += hit_f32

    @pl.when(k == pl.num_programs(1) - 1)
    def _():
        counts = jnp.sum(acc_ref[...], axis=1)                  # [C, 128]
        counts = jnp.sum(counts, axis=1, keepdims=True)         # [C, 1]
        if pad_count:
            # Padded token columns are exactly zero, so the argmax above counted each
            # of them toward channel 0; subtract that known constant here instead of
            # masking every tile in the hot loop.
            ch = lax.broadcasted_iota(jnp.int32, counts.shape, 0)
            counts = counts - jnp.where(ch == 0, float(pad_count), 0.0)
        # mean-pooled embedding == (counts/S)^T @ emb  (bcast-mul + sublane reduce)
        pooled = jnp.sum(emb_ref[...] * (counts * (1.0 / seq_len)),
                         axis=0, keepdims=True)                 # [1, H]
        logits = jnp.dot(pooled, w_ref[...],
                         preferred_element_type=jnp.float32) + bias_ref[...]
        # softmax over classes (torch.nn.functional.softmax(logits, dim=-1))
        mx = jnp.max(logits, axis=-1, keepdims=True)
        e = jnp.exp(logits - mx)
        out_ref[...] = e / jnp.sum(e, axis=-1, keepdims=True)


def hf_forward_wrapper(input_tensor, emb, w, bias):
    if input_tensor.ndim != 3:
        raise ValueError(f"Expected 3-D input, got {input_tensor.ndim}-D")
    bsz, seq_len, n_channels = input_tensor.shape
    assert emb.shape[0] == n_channels

    # Glue (plain JAX): stream x as bf16 (exact for 0/1 one-hots), channel-major so
    # the long token axis is lane-dense, then block tokens into [ROWS, 128] slabs
    # (the reshape is free since S is contiguous).
    # TODO(synk): produce the one-hot channel-major (and bf16) upstream so this
    # single transpose copy over the full input disappears as well.
    x = jnp.transpose(input_tensor.astype(jnp.bfloat16), (0, 2, 1))     # [B, C, S]

    s_pad_min = _round_up(seq_len, 128)
    if s_pad_min <= MAX_TILE_S:
        num_k, tile_s = 1, s_pad_min          # single tile: any multiple of 128 is fine
    else:
        num_k = -(-s_pad_min // MAX_TILE_S)   # even split; ROWS stays a multiple of 8
        tile_s = _round_up(-(-seq_len // num_k), 1024)
    s_pad = tile_s * num_k
    pad_count = s_pad - seq_len
    if pad_count:
        x = jnp.pad(x, ((0, 0), (0, 0), (0, pad_count)))
    rows_total = s_pad // 128
    rows = tile_s // 128
    x = x.reshape(bsz, n_channels, rows_total, 128)
    fold_rows = 8 if (rows > 8 and rows % 8 == 0) else rows

    out = pl.pallas_call(
        functools.partial(_wrapper_kernel, seq_len=seq_len, pad_count=pad_count),
        out_shape=jax.ShapeDtypeStruct((bsz, 1, NUM_CLASSES), jnp.float32),
        grid_spec=pltpu.PrefetchScalarGridSpec(
            num_scalar_prefetch=0,
            grid=(bsz, num_k),                                   # reduction axis last
            in_specs=[
                # x: one (C, ROWS, 128) tile per (batch, seq_tile) step, double-buffered
                pl.BlockSpec((None, n_channels, rows, 128), lambda b, k: (b, 0, k, 0)),
                # small params: constant index_map -> stay VMEM-resident across the grid
                pl.BlockSpec(emb.shape, lambda b, k: (0, 0)),
                pl.BlockSpec(w.shape, lambda b, k: (0, 0)),
                pl.BlockSpec(bias.shape, lambda b, k: (0, 0)),
            ],
            out_specs=pl.BlockSpec((None, 1, NUM_CLASSES), lambda b, k: (b, 0, 0)),
            scratch_shapes=[pltpu.VMEM((n_channels, fold_rows, 128), jnp.float32)],
        ),
        compiler_params=pltpu.CompilerParams(
            dimension_semantics=("parallel", "arbitrary")),
    )(x, emb, w, bias)
    return out.reshape(bsz, NUM_CLASSES)


if __name__ == "__main__":
    # TODO(synk): the HuggingFace tokenizer + HyenaDNA checkpoint are replaced by a
    # deterministic synthetic classifier (embedding -> mean-pool -> linear head);
    # the wrapper's argmax-decode and softmax semantics are reproduced exactly.
    key = jax.random.PRNGKey(0)
    k_x, k_e, k_w, k_b = jax.random.split(key, 4)

    batch, seq_len = 2, 8
    ids = jax.random.randint(k_x, (batch, seq_len), 0, VOCAB)
    x = jax.nn.one_hot(ids, VOCAB, dtype=jnp.float32)            # [2, 8, 5]

    emb = jax.random.normal(k_e, (VOCAB, HIDDEN), jnp.float32) * 0.1
    w = jax.random.normal(k_w, (HIDDEN, NUM_CLASSES), jnp.float32) * 0.1
    bias = jax.random.normal(k_b, (1, NUM_CLASSES), jnp.float32) * 0.1

    probs = jax.jit(hf_forward_wrapper)(x, emb, w, bias)
    jax.block_until_ready(probs)

    # plain-JAX reference of the same synthetic forward pass
    idx_ref = jnp.argmax(x, axis=2)                 # argmax decode, as in the wrapper
    emb_ref = emb[idx_ref]                          # [B, S, H]
    pooled_ref = emb_ref.mean(axis=1)               # [B, H]
    logits_ref = pooled_ref @ w + bias              # [B, NC]
    probs_ref = jax.nn.softmax(logits_ref, axis=-1)

    assert probs.shape == (batch, NUM_CLASSES)
    assert jnp.allclose(probs, probs_ref, atol=1e-5)
    print("KERNEL_OK")
</pallas_src>

<mosaic_0001>
module attributes {stable_mosaic.version = 11 : i64} {
  func.func @_wrapper_kernel(%arg0: i32, %arg1: i32, %arg2: memref<1x5x1x128xbf16, #tpu.memory_space<vmem>>, %arg3: memref<5x32xf32, #tpu.memory_space<vmem>>, %arg4: memref<32x2xf32, #tpu.memory_space<vmem>>, %arg5: memref<1x2xf32, #tpu.memory_space<vmem>>, %arg6: memref<1x1x2xf32, #tpu.memory_space<vmem>>, %arg7: memref<5x1x128xf32, #tpu.memory_space<vmem>>) attributes {dimension_semantics = [#tpu.dimension_semantics<parallel>, #tpu.dimension_semantics<arbitrary>], iteration_bounds = array<i64: 2, 1>, scalar_prefetch = 0 : i64, scratch_operands = 1 : i64, tpu.core_type = #tpu.core_type<tc>, window_params = [{transform_indices = @transform_0, window_bounds = array<i64: 1, 5, 1, 128>}, {pipeline_mode = #tpu.pipeline_mode<synchronous>, transform_indices = @transform_1, window_bounds = array<i64: 5, 32>}, {pipeline_mode = #tpu.pipeline_mode<synchronous>, transform_indices = @transform_2, window_bounds = array<i64: 32, 2>}, {pipeline_mode = #tpu.pipeline_mode<synchronous>, transform_indices = @transform_3, window_bounds = array<i64: 1, 2>}, {transform_indices = @transform_4, window_bounds = array<i64: 1, 1, 2>}]} {
    %c0_i32 = arith.constant 0 : i32
    %0 = arith.cmpi eq, %arg1, %c0_i32 : i32
    %1 = arith.extui %0 : i1 to i32
    %c0_i32_0 = arith.constant 0 : i32
    %2 = arith.cmpi ne, %1, %c0_i32_0 : i32
    scf.if %2 {
      %cst = arith.constant 0.000000e+00 : f32
      %78 = vector.broadcast %cst : f32 to vector<5x1x128xf32>
      %c0_48 = arith.constant 0 : index
      %c0_49 = arith.constant 0 : index
      %c0_50 = arith.constant 0 : index
      %79 = vector.load %arg7[%c0_48, %c0_49, %c0_50] : memref<5x1x128xf32, #tpu.memory_space<vmem>>, vector<5x1x128xf32>
      tpu.vector_store %arg7[%c0_48, %c0_49, %c0_50], %78 {strides = array<i32>} : memref<5x1x128xf32, #tpu.memory_space<vmem>>, vector<5x1x128xf32>,
    } else {
    }
    %c0 = arith.constant 0 : index
    %c0_1 = arith.constant 0 : index
    %c0_2 = arith.constant 0 : index
    %c0_3 = arith.constant 0 : index
    %3 = vector.load %arg2[%c0, %c0_1, %c0_2, %c0_3] : memref<1x5x1x128xbf16, #tpu.memory_space<vmem>>, vector<1x1x1x128xbf16>
    %4 = vector.shape_cast %3 : vector<1x1x1x128xbf16> to vector<1x128xbf16>
    %5 = arith.extf %4 : vector<1x128xbf16> to vector<1x128xf32>
    %c0_4 = arith.constant 0 : index
    %c1 = arith.constant 1 : index
    %c0_5 = arith.constant 0 : index
    %c0_6 = arith.constant 0 : index
    %6 = vector.load %arg2[%c0_4, %c1, %c0_5, %c0_6] : memref<1x5x1x128xbf16, #tpu.memory_space<vmem>>, vector<1x1x1x128xbf16>
    %7 = vector.shape_cast %6 : vector<1x1x1x128xbf16> to vector<1x128xbf16>
    %8 = arith.extf %7 : vector<1x128xbf16> to vector<1x128xf32>
    %c0_7 = arith.constant 0 : index
    %c2 = arith.constant 2 : index
    %c0_8 = arith.constant 0 : index
    %c0_9 = arith.constant 0 : index
    %9 = vector.load %arg2[%c0_7, %c2, %c0_8, %c0_9] : memref<1x5x1x128xbf16, #tpu.memory_space<vmem>>, vector<1x1x1x128xbf16>
    %10 = vector.shape_cast %9 : vector<1x1x1x128xbf16> to vector<1x128xbf16>
    %11 = arith.extf %10 : vector<1x128xbf16> to vector<1x128xf32>
    %c0_10 = arith.constant 0 : index
    %c3 = arith.constant 3 : index
    %c0_11 = arith.constant 0 : index
    %c0_12 = arith.constant 0 : index
    %12 = vector.load %arg2[%c0_10, %c3, %c0_11, %c0_12] : memref<1x5x1x128xbf16, #tpu.memory_space<vmem>>, vector<1x1x1x128xbf16>
    %13 = vector.shape_cast %12 : vector<1x1x1x128xbf16> to vector<1x128xbf16>
    %14 = arith.extf %13 : vector<1x128xbf16> to vector<1x128xf32>
    %c0_13 = arith.constant 0 : index
    %c4 = arith.constant 4 : index
    %c0_14 = arith.constant 0 : index
    %c0_15 = arith.constant 0 : index
    %15 = vector.load %arg2[%c0_13, %c4, %c0_14, %c0_15] : memref<1x5x1x128xbf16, #tpu.memory_space<vmem>>, vector<1x1x1x128xbf16>
    %16 = vector.shape_cast %15 : vector<1x1x1x128xbf16> to vector<1x128xbf16>
    %17 = arith.extf %16 : vector<1x128xbf16> to vector<1x128xf32>
    %18 = arith.maximumf %5, %8 : vector<1x128xf32>
    %19 = arith.maximumf %18, %11 : vector<1x128xf32>
    %20 = arith.maximumf %19, %14 : vector<1x128xf32>
    %21 = arith.maximumf %20, %17 : vector<1x128xf32>
    %22 = arith.cmpf oge, %5, %21 : vector<1x128xf32>
    %23 = arith.extui %22 : vector<1x128xi1> to vector<1x128xi32>
    %24 = arith.sitofp %23 : vector<1x128xi32> to vector<1x128xf32>
    %c0_16 = arith.constant 0 : index
    %c0_17 = arith.constant 0 : index
    %c0_18 = arith.constant 0 : index
    %25 = vector.load %arg7[%c0_16, %c0_17, %c0_18] : memref<5x1x128xf32, #tpu.memory_space<vmem>>, vector<1x1x128xf32>
    %26 = vector.shape_cast %25 : vector<1x1x128xf32> to vector<1x128xf32>
    %27 = arith.addf %26, %24 : vector<1x128xf32>
    %c0_19 = arith.constant 0 : index
    %c0_20 = arith.constant 0 : index
    %c0_21 = arith.constant 0 : index
    %28 = vector.load %arg7[%c0_19, %c0_20, %c0_21] : memref<5x1x128xf32, #tpu.memory_space<vmem>>, vector<1x1x128xf32>
    %29 = vector.shape_cast %28 : vector<1x1x128xf32> to vector<1x128xf32>
    %30 = vector.shape_cast %27 : vector<1x128xf32> to vector<1x1x128xf32>
    tpu.vector_store %arg7[%c0_19, %c0_20, %c0_21], %30 {strides = array<i32>} : memref<5x1x128xf32, #tpu.memory_space<vmem>>, vector<1x1x128xf32>,
    %31 = arith.cmpf oge, %8, %21 : vector<1x128xf32>
    %32 = arith.cmpf olt, %5, %21 : vector<1x128xf32>
    %33 = arith.andi %31, %32 : vector<1x128xi1>
    %34 = arith.extui %33 : vector<1x128xi1> to vector<1x128xi32>
    %35 = arith.sitofp %34 : vector<1x128xi32> to vector<1x128xf32>
    %c1_22 = arith.constant 1 : index
    %c0_23 = arith.constant 0 : index
    %c0_24 = arith.constant 0 : index
    %36 = vector.load %arg7[%c1_22, %c0_23, %c0_24] : memref<5x1x128xf32, #tpu.memory_space<vmem>>, vector<1x1x128xf32>
    %37 = vector.shape_cast %36 : vector<1x1x128xf32> to vector<1x128xf32>
    %38 = arith.addf %37, %35 : vector<1x128xf32>
    %c1_25 = arith.constant 1 : index
    %c0_26 = arith.constant 0 : index
    %c0_27 = arith.constant 0 : index
    %39 = vector.load %arg7[%c1_25, %c0_26, %c0_27] : memref<5x1x128xf32, #tpu.memory_space<vmem>>, vector<1x1x128xf32>
    %40 = vector.shape_cast %39 : vector<1x1x128xf32> to vector<1x128xf32>
    %41 = vector.shape_cast %38 : vector<1x128xf32> to vector<1x1x128xf32>
    tpu.vector_store %arg7[%c1_25, %c0_26, %c0_27], %41 {strides = array<i32>} : memref<5x1x128xf32, #tpu.memory_space<vmem>>, vector<1x1x128xf32>,
    %42 = arith.cmpf oge, %11, %21 : vector<1x128xf32>
    %43 = arith.cmpf olt, %18, %21 : vector<1x128xf32>
    %44 = arith.andi %42, %43 : vector<1x128xi1>
    %45 = arith.extui %44 : vector<1x128xi1> to vector<1x128xi32>
    %46 = arith.sitofp %45 : vector<1x128xi32> to vector<1x128xf32>
    %c2_28 = arith.constant 2 : index
    %c0_29 = arith.constant 0 : index
    %c0_30 = arith.constant 0 : index
    %47 = vector.load %arg7[%c2_28, %c0_29, %c0_30] : memref<5x1x128xf32, #tpu.memory_space<vmem>>, vector<1x1x128xf32>
    %48 = vector.shape_cast %47 : vector<1x1x128xf32> to vector<1x128xf32>
    %49 = arith.addf %48, %46 : vector<1x128xf32>
    %c2_31 = arith.constant 2 : index
    %c0_32 = arith.constant 0 : index
    %c0_33 = arith.constant 0 : index
    %50 = vector.load %arg7[%c2_31, %c0_32, %c0_33] : memref<5x1x128xf32, #tpu.memory_space<vmem>>, vector<1x1x128xf32>
    %51 = vector.shape_cast %50 : vector<1x1x128xf32> to vector<1x128xf32>
    %52 = vector.shape_cast %49 : vector<1x128xf32> to vector<1x1x128xf32>
    tpu.vector_store %arg7[%c2_31, %c0_32, %c0_33], %52 {strides = array<i32>} : memref<5x1x128xf32, #tpu.memory_space<vmem>>, vector<1x1x128xf32>,
    %53 = arith.cmpf oge, %14, %21 : vector<1x128xf32>
    %54 = arith.cmpf olt, %19, %21 : vector<1x128xf32>
    %55 = arith.andi %53, %54 : vector<1x128xi1>
    %56 = arith.extui %55 : vector<1x128xi1> to vector<1x128xi32>
    %57 = arith.sitofp %56 : vector<1x128xi32> to vector<1x128xf32>
    %c3_34 = arith.constant 3 : index
    %c0_35 = arith.constant 0 : index
    %c0_36 = arith.constant 0 : index
    %58 = vector.load %arg7[%c3_34, %c0_35, %c0_36] : memref<5x1x128xf32, #tpu.memory_space<vmem>>, vector<1x1x128xf32>
    %59 = vector.shape_cast %58 : vector<1x1x128xf32> to vector<1x128xf32>
    %60 = arith.addf %59, %57 : vector<1x128xf32>
    %c3_37 = arith.constant 3 : index
    %c0_38 = arith.constant 0 : index
    %c0_39 = arith.constant 0 : index
    %61 = vector.load %arg7[%c3_37, %c0_38, %c0_39] : memref<5x1x128xf32, #tpu.memory_space<vmem>>, vector<1x1x128xf32>
    %62 = vector.shape_cast %61 : vector<1x1x128xf32> to vector<1x128xf32>
    %63 = vector.shape_cast %60 : vector<1x128xf32> to vector<1x1x128xf32>
    tpu.vector_store %arg7[%c3_37, %c0_38, %c0_39], %63 {strides = array<i32>} : memref<5x1x128xf32, #tpu.memory_space<vmem>>, vector<1x1x128xf32>,
    %64 = arith.cmpf oge, %17, %21 : vector<1x128xf32>
    %65 = arith.cmpf olt, %20, %21 : vector<1x128xf32>
    %66 = arith.andi %64, %65 : vector<1x128xi1>
    %67 = arith.extui %66 : vector<1x128xi1> to vector<1x128xi32>
    %68 = arith.sitofp %67 : vector<1x128xi32> to vector<1x128xf32>
    %c4_40 = arith.constant 4 : index
    %c0_41 = arith.constant 0 : index
    %c0_42 = arith.constant 0 : index
    %69 = vector.load %arg7[%c4_40, %c0_41, %c0_42] : memref<5x1x128xf32, #tpu.memory_space<vmem>>, vector<1x1x128xf32>
    %70 = vector.shape_cast %69 : vector<1x1x128xf32> to vector<1x128xf32>
    %71 = arith.addf %70, %68 : vector<1x128xf32>
    %c4_43 = arith.constant 4 : index
    %c0_44 = arith.constant 0 : index
    %c0_45 = arith.constant 0 : index
    %72 = vector.load %arg7[%c4_43, %c0_44, %c0_45] : memref<5x1x128xf32, #tpu.memory_space<vmem>>, vector<1x1x128xf32>
    %73 = vector.shape_cast %72 : vector<1x1x128xf32> to vector<1x128xf32>
    %74 = vector.shape_cast %71 : vector<1x128xf32> to vector<1x1x128xf32>
    tpu.vector_store %arg7[%c4_43, %c0_44, %c0_45], %74 {strides = array<i32>} : memref<5x1x128xf32, #tpu.memory_space<vmem>>, vector<1x1x128xf32>,
    %c0_i32_46 = arith.constant 0 : i32
    %75 = arith.cmpi eq, %arg1, %c0_i32_46 : i32
    %76 = arith.extui %75 : i1 to i32
    %c0_i32_47 = arith.constant 0 : i32
    %77 = arith.cmpi ne, %76, %c0_i32_47 : i32
    scf.if %77 {
      %c0_48 = arith.constant 0 : index
      %c0_49 = arith.constant 0 : index
      %c0_50 = arith.constant 0 : index
      %78 = vector.load %arg7[%c0_48, %c0_49, %c0_50] : memref<5x1x128xf32, #tpu.memory_space<vmem>>, vector<5x1x128xf32>
      %cst = arith.constant dense<0.000000e+00> : vector<5x128xf32>
      %79 = vector.multi_reduction <add>, %78, %cst [1] : vector<5x1x128xf32> to vector<5x128xf32>
      %cst_51 = arith.constant dense<0.000000e+00> : vector<5xf32>
      %80 = vector.multi_reduction <add>, %79, %cst_51 [1] : vector<5x128xf32> to vector<5xf32>
      %81 = vector.shape_cast %80 : vector<5xf32> to vector<5x1xf32>
      %82 = tpu.iota {dimensions = array<i32: 0>} : vector<5x1xi32>
      %c0_i32_52 = arith.constant 0 : i32
      %83 = vector.broadcast %c0_i32_52 : i32 to vector<5x1xi32>
      %84 = arith.cmpi eq, %82, %83 : vector<5x1xi32>
      %cst_53 = arith.constant 1.200000e+02 : f32
      %cst_54 = arith.constant 0.000000e+00 : f32
      %85 = vector.broadcast %cst_53 : f32 to vector<5x1xf32>
      %86 = vector.broadcast %cst_54 : f32 to vector<5x1xf32>
      %87 = arith.select %84, %85, %86 : vector<5x1xi1>, vector<5x1xf32>
      %88 = arith.subf %81, %87 : vector<5x1xf32>
      %c0_55 = arith.constant 0 : index
      %c0_56 = arith.constant 0 : index
      %89 = vector.load %arg3[%c0_55, %c0_56] : memref<5x32xf32, #tpu.memory_space<vmem>>, vector<5x32xf32>
      %cst_57 = arith.constant 1.250000e-01 : f32
      %90 = vector.broadcast %cst_57 : f32 to vector<5x1xf32>
      %91 = arith.mulf %88, %90 : vector<5x1xf32>
      %92 = vector.broadcast %91 : vector<5x1xf32> to vector<5x32xf32>
      %93 = arith.mulf %89, %92 : vector<5x32xf32>
      %cst_58 = arith.constant dense<0.000000e+00> : vector<32xf32>
      %94 = vector.multi_reduction <add>, %93, %cst_58 [0] : vector<5x32xf32> to vector<32xf32>
      %95 = vector.shape_cast %94 : vector<32xf32> to vector<1x32xf32>
      %c0_59 = arith.constant 0 : index
      %c0_60 = arith.constant 0 : index
      %96 = vector.load %arg4[%c0_59, %c0_60] : memref<32x2xf32, #tpu.memory_space<vmem>>, vector<32x2xf32>
      %cst_61 = arith.constant dense<0.000000e+00> : vector<1x2xf32>
      %97 = tpu.matmul %95, %96, %cst_61 {dimension_numbers = #tpu.dot_dimension_numbers<[1], [0], [0], [1], [0, 0, 1, 1], [], []>} : vector<1x32xf32>, vector<32x2xf32>, vector<1x2xf32> -> vector<1x2xf32>
      %c0_62 = arith.constant 0 : index
      %c0_63 = arith.constant 0 : index
      %98 = vector.load %arg5[%c0_62, %c0_63] : memref<1x2xf32, #tpu.memory_space<vmem>>, vector<1x2xf32>
      %99 = arith.addf %97, %98 : vector<1x2xf32>
      %cst_64 = arith.constant dense<0xFF800000> : vector<1xf32>
      %100 = vector.multi_reduction <maximumf>, %99, %cst_64 [1] : vector<1x2xf32> to vector<1xf32>
      %101 = vector.shape_cast %100 : vector<1xf32> to vector<1x1xf32>
      %102 = vector.broadcast %101 : vector<1x1xf32> to vector<1x2xf32>
      %103 = arith.subf %99, %102 : vector<1x2xf32>
      %104 = math.exp %103 : vector<1x2xf32>
      %cst_65 = arith.constant dense<0.000000e+00> : vector<1xf32>
      %105 = vector.multi_reduction <add>, %104, %cst_65 [1] : vector<1x2xf32> to vector<1xf32>
      %106 = vector.shape_cast %105 : vector<1xf32> to vector<1x1xf32>
      %107 = vector.broadcast %106 : vector<1x1xf32> to vector<1x2xf32>
      %108 = arith.divf %104, %107 : vector<1x2xf32>
      %c0_66 = arith.constant 0 : index
      %c0_67 = arith.constant 0 : index
      %c0_68 = arith.constant 0 : index
      %109 = vector.load %arg6[%c0_66, %c0_67, %c0_68] : memref<1x1x2xf32, #tpu.memory_space<vmem>>, vector<1x1x2xf32>
      %110 = vector.shape_cast %109 : vector<1x1x2xf32> to vector<1x2xf32>
      %111 = vector.shape_cast %108 : vector<1x2xf32> to vector<1x1x2xf32>
      tpu.vector_store %arg6[%c0_66, %c0_67, %c0_68], %111 {strides = array<i32>} : memref<1x1x2xf32, #tpu.memory_space<vmem>>, vector<1x1x2xf32>,
    } else {
    }
    return
  }
  func.func @transform_0(%arg0: i32, %arg1: i32) -> (i32, i32, i32, i32) {
    %c0_i32 = arith.constant 0 : i32
    %c0_i32_0 = arith.constant 0 : i32
    %c0_i32_1 = arith.constant 0 : i32
    return %arg0, %c0_i32, %arg1, %c0_i32_0 : i32, i32, i32, i32
  }
  func.func @transform_1(%arg0: i32, %arg1: i32) -> (i32, i32) {
    %c0_i32 = arith.constant 0 : i32
    %c0_i32_0 = arith.constant 0 : i32
    %c0_i32_1 = arith.constant 0 : i32
    return %c0_i32, %c0_i32_0 : i32, i32
  }
  func.func @transform_2(%arg0: i32, %arg1: i32) -> (i32, i32) {
    %c0_i32 = arith.constant 0 : i32
    %c0_i32_0 = arith.constant 0 : i32
    %c0_i32_1 = arith.constant 0 : i32
    return %c0_i32, %c0_i32_0 : i32, i32
  }
  func.func @transform_3(%arg0: i32, %arg1: i32) -> (i32, i32) {
    %c0_i32 = arith.constant 0 : i32
    %c0_i32_0 = arith.constant 0 : i32
    %c0_i32_1 = arith.constant 0 : i32
    return %c0_i32, %c0_i32_0 : i32, i32
  }
  func.func @transform_4(%arg0: i32, %arg1: i32) -> (i32, i32, i32) {
    %c0_i32 = arith.constant 0 : i32
    %c0_i32_0 = arith.constant 0 : i32
    %c0_i32_1 = arith.constant 0 : i32
    return %arg0, %c0_i32, %c0_i32_0 : i32, i32, i32
  }
}

</mosaic_0001>

<llo_original>
// kernel: hf_forward_wrapper.1
$region0: #{hf_forward_wrapper.1}
  #allocation0 [shape = 'u32[]', space=smem, size = 0x4, offset = 0x4, fixed_abs, tag = 'smem constant byte address 0x4 - core index']
  #allocation1 [shape = 'u32[72,128]{1,0:T(1,128)}', space=vmem, size = 0x9000, scoped, tag = 'internal scratch']
  #allocation2 [shape = 'f32[5,1,128]{2,1,0:T(1,128)}', space=vmem, size = 0xa00, scoped, tag = 'scratch operand']
  %s0 = inlined_call_operand.vmem [shape: bf16[2,5,1,128], index: 0, kind: input, shape index: {}]
  %s1 = inlined_call_operand.vmem [shape: f32[5,32], index: 1, kind: input, shape index: {}]
  %s2 = inlined_call_operand.vmem [shape: f32[32,2], index: 2, kind: input, shape index: {}]
  %s3 = inlined_call_operand.vmem [shape: f32[1,2], index: 3, kind: input, shape index: {}]
  %s4 = inlined_call_operand.hbm [shape: f32[2,1,2], index: 4, kind: output, shape index: {}]
  %s5 = sld [smem:[#allocation0]]
  $region57: #{hf_forward_wrapper.1} parent=0
    _
  %s7 = ssub.s32 1, %s5
  %s8 = scalar_select 0, %s7, %s5
  $region1: #{hf_forward_wrapper.1} parent=0
    #allocation3 [shape = 'u8[1024]{0}', space=vmem, size = 0x400, scoped, tag = 'output window, operand 0']
    #allocation4 [shape = 's32[2]{0}', space=sflag, size = 0x8, scoped, tag = 'scoped memory for hf_forward_wrapper.1']
    %9 = vsyncpa [#allocation4], 0
    %s10 = scalar_lea.sflag [#allocation4], 1
    %11 = vsyncpa %s10, 0
    loop: start=0, step=1, limit=4
    $region2: #{hf_forward_wrapper.1} parent=1 // loop_pre_header
      _
    $region3: #{hf_forward_wrapper.1} parent=1 // loop_header
      %s13 = sphi 0, %s17
      %p14 = scmp.ge.s32.totalorder %s13, 4
      %s20 = sphi 0, %s32
      %s21 = sphi 0, %s28
      %s22 = sphi 0, %s20
      %s23 = sphi 0, %s21
      %s24 = sphi 0, %s22
      %s25 = sphi 0, %s23
      %s37 = sphi 0, %s39
      %s40 = sphi 0, %s37
      %s41 = sphi 0, %s40
      %s57 = sphi 0, %s41
      %s61 = sphi 0, %s61
      %s63 = sphi 0, %s61
      %s64 = sphi 0, %s63
      %s78 = sphi 0, %s64
      %s82 = sphi 0, %s82
      %s84 = sphi 0, %s82
      %s85 = sphi 0, %s84
      %s99 = sphi 0, %s85
      %s103 = sphi 0, %s103
      %s105 = sphi 0, %s103
      %s106 = sphi 0, %s105
      %s120 = sphi 0, %s106
      %s126 = sphi 0, %s128
      %s129 = sphi 0, %s126
      %s130 = sphi 0, %s129
      %s146 = sphi 0, %s130
    $region4: #{hf_forward_wrapper.1} parent=1 // loop_header_branch
      %16 = sbr.rel (%p14) target = $region8
    $region5: #{hf_forward_wrapper.1} parent=1 // loop_body
      %s18 = ssub.s32 %s13, 1
      %s19 = ssub.s32 %s13, 2
      %s26 = sadd.s32 1, %s21
      %p27 = scmp.ge.s32.totalorder %s26, 1
      %s28 = scalar_select %p27, 0, %s26
      %s29 = sadd.s32 1, %s20
      %s30 = scalar_select %p27, %s29, %s20
      %p31 = scmp.ge.s32.totalorder %s30, 2
      %s32 = scalar_select %p31, 0, %s30
      %s33 = ssub.s32 %s20, %s32
      %s34 = ssub.s32 %s21, %s28
      %s35 = sor.u32 %s33, %s34
      %p36 = scmp.eq.s32.totalorder %s35, 0
      %s38 = sadd.s32 %s37, 1
      %s39 = scalar_select %p36, %s37, %s38
      %p42 = pneg %p36
      %p43 = scmp.eq.s32.totalorder %s13, 1
      %p44 = por %p42, %p43
      %p45 = scmp.ne.s32.totalorder %s37, %s40
      %p46 = scmp.eq.s32.totalorder %s13, 0
      %p47 = por %p45, %p46
      %p48 = scmp.ne.s32.totalorder %s37, %s40
      %p49 = scmp.eq.s32.totalorder %s18, 1
      %p50 = por %p48, %p49
      %p51 = scmp.ne.s32.totalorder %s40, %s41
      %p52 = scmp.eq.s32.totalorder %s18, 0
      %p53 = por %p51, %p52
      %p54 = scmp.ne.s32.totalorder %s40, %s41
      %p55 = scmp.eq.s32.totalorder %s19, 1
      %p56 = por %p54, %p55
      %p58 = scmp.ne.s32.totalorder %s41, %s57
      %p59 = scmp.eq.s32.totalorder %s19, 0
      %p60 = por %p58, %p59
      %s62 = sadd.s32 %s61, 1
      %p65 = scmp.eq.s32.totalorder %s13, 1
      %p66 = scmp.ne.s32.totalorder %s61, %s63
      %p67 = scmp.eq.s32.totalorder %s13, 0
      %p68 = por %p66, %p67
      %p69 = scmp.ne.s32.totalorder %s61, %s63
      %p70 = scmp.eq.s32.totalorder %s18, 1
      %p71 = por %p69, %p70
      %p72 = scmp.ne.s32.totalorder %s63, %s64
      %p73 = scmp.eq.s32.totalorder %s18, 0
      %p74 = por %p72, %p73
      %p75 = scmp.ne.s32.totalorder %s63, %s64
      %p76 = scmp.eq.s32.totalorder %s19, 1
      %p77 = por %p75, %p76
      %p79 = scmp.ne.s32.totalorder %s64, %s78
      %p80 = scmp.eq.s32.totalorder %s19, 0
      %p81 = por %p79, %p80
      %s83 = sadd.s32 %s82, 1
      %p86 = scmp.eq.s32.totalorder %s13, 1
      %p87 = scmp.ne.s32.totalorder %s82, %s84
      %p88 = scmp.eq.s32.totalorder %s13, 0
      %p89 = por %p87, %p88
      %p90 = scmp.ne.s32.totalorder %s82, %s84
      %p91 = scmp.eq.s32.totalorder %s18, 1
      %p92 = por %p90, %p91
      %p93 = scmp.ne.s32.totalorder %s84, %s85
      %p94 = scmp.eq.s32.totalorder %s18, 0
      %p95 = por %p93, %p94
      %p96 = scmp.ne.s32.totalorder %s84, %s85
      %p97 = scmp.eq.s32.totalorder %s19, 1
      %p98 = por %p96, %p97
      %p100 = scmp.ne.s32.totalorder %s85, %s99
      %p101 = scmp.eq.s32.totalorder %s19, 0
      %p102 = por %p100, %p101
      %s104 = sadd.s32 %s103, 1
      %p107 = scmp.eq.s32.totalorder %s13, 1
      %p108 = scmp.ne.s32.totalorder %s103, %s105
      %p109 = scmp.eq.s32.totalorder %s13, 0
      %p110 = por %p108, %p109
      %p111 = scmp.ne.s32.totalorder %s103, %s105
      %p112 = scmp.eq.s32.totalorder %s18, 1
      %p113 = por %p111, %p112
      %p114 = scmp.ne.s32.totalorder %s105, %s106
      %p115 = scmp.eq.s32.totalorder %s18, 0
      %p116 = por %p114, %p115
      %p117 = scmp.ne.s32.totalorder %s105, %s106
      %p118 = scmp.eq.s32.totalorder %s19, 1
      %p119 = por %p117, %p118
      %p121 = scmp.ne.s32.totalorder %s106, %s120
      %p122 = scmp.eq.s32.totalorder %s19, 0
      %p123 = por %p121, %p122
      %s124 = ssub.s32 %s20, %s32
      %p125 = scmp.eq.s32.totalorder %s124, 0
      %s127 = sadd.s32 %s126, 1
      %s128 = scalar_select %p125, %s126, %s127
      %p131 = pneg %p125
      %p132 = scmp.eq.s32.totalorder %s13, 1
      %p133 = por %p131, %p132
      %p134 = scmp.ne.s32.totalorder %s126, %s129
      %p135 = scmp.eq.s32.totalorder %s13, 0
      %p136 = por %p134, %p135
      %p137 = scmp.ne.s32.totalorder %s126, %s129
      %p138 = scmp.eq.s32.totalorder %s18, 1
      %p139 = por %p137, %p138
      %p140 = scmp.ne.s32.totalorder %s129, %s130
      %p141 = scmp.eq.s32.totalorder %s18, 0
      %p142 = por %p140, %p141
      %p143 = scmp.ne.s32.totalorder %s129, %s130
      %p144 = scmp.eq.s32.totalorder %s19, 1
      %p145 = por %p143, %p144
      %p147 = scmp.ne.s32.totalorder %s130, %s146
      %p148 = scmp.eq.s32.totalorder %s19, 0
      %p149 = por %p147, %p148
      %p150 = scmp.le.s32.totalorder 1, %s13
      %p151 = scmp.lt.s32.totalorder %s13, 3
      %p152 = pnand %p150, %p151
      %p153 = pneg %p152
      // Predicated region
      $region9: #{hf_forward_wrapper.1} parent=5 // pred_check
        _
      $region10: #{hf_forward_wrapper.1} parent=5 // pred_check_branch
        %155 = sbr.rel (%p152) target = $region12
      $region11: #{hf_forward_wrapper.1} parent=5 // pred_region
        %s156 = ssub.s32 %s13, 1
        // Predicated region
        $region13: #{hf_forward_wrapper.1} parent=11 // pred_check
          %p157 = pneg %p74
        $region14: #{hf_forward_wrapper.1} parent=11 // pred_check_branch
          %159 = sbr.rel (%p157) target = $region16
        $region15: #{hf_forward_wrapper.1} parent=11 // pred_region
          _
        $region16: #{hf_forward_wrapper.1} parent=11 // pred_fallthru
          _
        // Predicated region
        $region17: #{hf_forward_wrapper.1} parent=11 // pred_check
          %p160 = pneg %p95
        $region18: #{hf_forward_wrapper.1} parent=11 // pred_check_branch
          %162 = sbr.rel (%p160) target = $region20
        $region19: #{hf_forward_wrapper.1} parent=11 // pred_region
          _
        $region20: #{hf_forward_wrapper.1} parent=11 // pred_fallthru
          _
        // Predicated region
        $region21: #{hf_forward_wrapper.1} parent=11 // pred_check
          %p163 = pneg %p116
        $region22: #{hf_forward_wrapper.1} parent=11 // pred_check_branch
          %165 = sbr.rel (%p163) target = $region24
        $region23: #{hf_forward_wrapper.1} parent=11 // pred_region
          _
        $region24: #{hf_forward_wrapper.1} parent=11 // pred_fallthru
          _
      $region12: #{hf_forward_wrapper.1} parent=5 // pred_fallthru
        _
      %p166 = scmp.lt.s32.totalorder %s13, 2
      // Predicated region
      $region25: #{hf_forward_wrapper.1} parent=5 // pred_check
        %p167 = pneg %p166
      $region26: #{hf_forward_wrapper.1} parent=5 // pred_check_branch
        %169 = sbr.rel (%p167) target = $region28
      $region27: #{hf_forward_wrapper.1} parent=5 // pred_region
        // Predicated region
        $region29: #{hf_forward_wrapper.1} parent=27 // pred_check
          %p170 = pneg %p47
        $region30: #{hf_forward_wrapper.1} parent=27 // pred_check_branch
          %172 = sbr.rel (%p170) target = $region32
        $region31: #{hf_forward_wrapper.1} parent=27 // pred_region
          %p173 = scmp.lt.s32.totalorder %s20, 1
          %s174 = scalar_select %p173, %s20, 1
          %p175 = scmp.lt.s32.totalorder %s21, 0
          %s176 = scalar_select %p175, %s21, 0
          %s177 = smul.addr %s174, 5
          %s178 = sadd.s32 %s176, %s177
          %s179 = scalar_lea.vmem %s0, %s178
        $region32: #{hf_forward_wrapper.1} parent=27 // pred_fallthru
          _
      $region28: #{hf_forward_wrapper.1} parent=5 // pred_fallthru
        _
      %p180 = scmp.le.s32.totalorder 1, %s13
      %p181 = scmp.lt.s32.totalorder %s13, 3
      %p182 = pnand %p180, %p181
      %p183 = pneg %p182
      // Predicated region
      $region33: #{hf_forward_wrapper.1} parent=5 // pred_check
        _
      $region34: #{hf_forward_wrapper.1} parent=5 // pred_check_branch
        %185 = sbr.rel (%p182) target = $region36
      $region35: #{hf_forward_wrapper.1} parent=5 // pred_region
        %s186 = ssub.s32 %s13, 1
        %p187 = scmp.lt.s32.totalorder %s22, 1
        %s188 = scalar_select %p187, %s22, 1
        %p189 = scmp.lt.s32.totalorder %s23, 0
        %s190 = scalar_select %p189, %s23, 0
        %s191 = smul.addr %s188, 5
        %s192 = sadd.s32 %s190, %s191
        %s193 = scalar_lea.vmem %s0, %s192
        %p194 = pneg %p53
        %p195 = pneg %p50
        %p196 = pneg %p74
        %p197 = pneg %p71
        %p198 = pneg %p95
        %p199 = pneg %p92
        %p200 = pneg %p116
        %p201 = pneg %p113
        %p202 = pneg %p142
        %p203 = pneg %p139
        %s204 = sand.u32 %s129, 1
        %s205 = scalar_lea.sflag [#allocation4], %s204
        %s206 = sand.u32 %s129, 1
        %s207 = scalar_lea.vmem [#allocation3], %s206
        %p208 = scmp.lt.s32.totalorder %s22, 1
        %s209 = scalar_select %p208, %s22, 1
        %p210 = scmp.lt.s32.totalorder %s23, 0
        %s211 = scalar_select %p210, %s23, 0
        %s212 = smul.addr %s209, 5
        %s213 = sadd.s32 %s211, %s212
        %s214 = scalar_lea.vmem %s0, %s213
        %p215 = scmp.eq.s32.totalorder %s23, 0
        // Predicated region
        $region37: #{hf_forward_wrapper.1} parent=35 // pred_check
          %p216 = pneg %p215
        $region38: #{hf_forward_wrapper.1} parent=35 // pred_check_branch
          %218 = sbr.rel (%p216) target = $region40
        $region39: #{hf_forward_wrapper.1} parent=35 // pred_region
          %219 = vst [vmem:[#allocation2] sm:$0x1] 0.0
          %220 = vst [vmem:[#allocation2 + $0x1] sm:$0x1] 0.0
          %221 = vst [vmem:[#allocation2 + $0x2] sm:$0x1] 0.0
          %222 = vst [vmem:[#allocation2 + $0x3] sm:$0x1] 0.0
          %223 = vst [vmem:[#allocation2 + $0x4] sm:$0x1] 0.0
        $region40: #{hf_forward_wrapper.1} parent=35 // pred_fallthru
          _
        %v224 = vld [vmem:[%s214] sm:$0x1]
        %v225 = vunpack.c.l.bf16 %v224
        %s226 = scalar_lea.vmem %s214, 1
        %v227 = vld [vmem:[%s226] sm:$0x1]
        %v228 = vunpack.c.l.bf16 %v227
        %s229 = scalar_lea.vmem %s214, 2
        %v230 = vld [vmem:[%s229] sm:$0x1]
        %v231 = vunpack.c.l.bf16 %v230
        %s232 = scalar_lea.vmem %s214, 3
        %v233 = vld [vmem:[%s232] sm:$0x1]
        %v234 = vunpack.c.l.bf16 %v233
        %s235 = scalar_lea.vmem %s214, 4
        %v236 = vld [vmem:[%s235] sm:$0x1]
        %v237 = vunpack.c.l.bf16 %v236
        %v238 = vmax.f32 %v225, %v228
        %v239 = vmax.f32 %v238, %v231
        %v240 = vmax.f32 %v239, %v234
        %v241 = vmax.f32 %v240, %v237
        %vm242 = vcmp.ge.f32.partialorder %v225, %v241
        %v243 = vsel %vm242, 1, 0
        %v244 = vcvt.s32.f32 %v243
        %v245 = vld [vmem:[#allocation2] sm:$0x1]
        %v246 = vadd.f32 %v245, %v244
        %247 = vst [vmem:[#allocation2] sm:$0x1] %v246
        %vm248 = vcmp.ge.f32.partialorder %v228, %v241
        %vm249 = vcmp.lt.f32.partialorder %v225, %v241
        %vm250 = vmand %vm248, %vm249
        %v251 = vsel %vm250, 1, 0
        %v252 = vcvt.s32.f32 %v251
        %s253 = scalar_lea.vmem [#allocation2], 1
        %v254 = vld [vmem:[%s253] sm:$0x1]
        %v255 = vadd.f32 %v254, %v252
        %256 = vst [vmem:[%s253] sm:$0x1] %v255
        %vm257 = vcmp.ge.f32.partialorder %v231, %v241
        %vm258 = vcmp.lt.f32.partialorder %v238, %v241
        %vm259 = vmand %vm257, %vm258
        %v260 = vsel %vm259, 1, 0
        %v261 = vcvt.s32.f32 %v260
        %s262 = scalar_lea.vmem [#allocation2], 2
        %v263 = vld [vmem:[%s262] sm:$0x1]
        %v264 = vadd.f32 %v263, %v261
        %265 = vst [vmem:[%s262] sm:$0x1] %v264
        %vm266 = vcmp.ge.f32.partialorder %v234, %v241
        %vm267 = vcmp.lt.f32.partialorder %v239, %v241
        %vm268 = vmand %vm266, %vm267
        %v269 = vsel %vm268, 1, 0
        %v270 = vcvt.s32.f32 %v269
        %s271 = scalar_lea.vmem [#allocation2], 3
        %v272 = vld [vmem:[%s271] sm:$0x1]
        %v273 = vadd.f32 %v272, %v270
        %274 = vst [vmem:[%s271] sm:$0x1] %v273
        %vm275 = vcmp.ge.f32.partialorder %v237, %v241
        %vm276 = vcmp.lt.f32.partialorder %v240, %v241
        %vm277 = vmand %vm275, %vm276
        %v278 = vsel %vm277, 1, 0
        %v279 = vcvt.s32.f32 %v278
        %s280 = scalar_lea.vmem [#allocation2], 4
        %v281 = vld [vmem:[%s280] sm:$0x1]
        %v282 = vadd.f32 %v281, %v279
        %283 = vst [vmem:[%s280] sm:$0x1] %v282
        // Predicated region
        $region41: #{hf_forward_wrapper.1} parent=35 // pred_check
          %p284 = pneg %p215
        $region42: #{hf_forward_wrapper.1} parent=35 // pred_check_branch
          %286 = sbr.rel (%p284) target = $region44
        $region43: #{hf_forward_wrapper.1} parent=35 // pred_region
          %v287 = vld [vmem:[#allocation2] sm:$0x1]
          %v288 = vld [vmem:[#allocation2 + $0x1] sm:$0x1]
          %v289 = vld [vmem:[#allocation2 + $0x2] sm:$0x1]
          %v290 = vld [vmem:[#allocation2 + $0x3] sm:$0x1]
          %v291 = vld [vmem:[#allocation2 + $0x4] sm:$0x1]
          %v292 = vadd.f32 %v287, 0.0
          %v293 = vadd.f32 %v288, 0.0
          %v294 = vadd.f32 %v289, 0.0
          %v295 = vadd.f32 %v290, 0.0
          %v296 = vadd.f32 %v291, 0.0
          %302 = vst [vmem:[#allocation1] ss:$9 sm:$0xff] %v292
          %s303 = scalar_lea.vmem [#allocation1], 1
          %304 = vst [vmem:[%s303] ss:$9 sm:$0xff] %v293
          %s305 = scalar_lea.vmem [#allocation1], 2
          %306 = vst [vmem:[%s305] ss:$9 sm:$0xff] %v294
          %s307 = scalar_lea.vmem [#allocation1], 3
          %308 = vst [vmem:[%s307] ss:$9 sm:$0xff] %v295
          %s309 = scalar_lea.vmem [#allocation1], 4
          %310 = vst [vmem:[%s309] ss:$9 sm:$0xff] %v296
          %v311 = vld [vmem:[#allocation1] sm:$0xff]
          %vm313 = vcmask 1044480
          %v314 = vsel %vm313, %v311, 0.0
          %315 = vadd.xlane.f32.xlu0 %v314
          %v316 = vpop.xlane.xlu0 %315
          %v317 = vlaneseq
          %v318 = vshrl.u32 %v317, 7
          %vm319 = vcmp.eq.s32.totalorder %v318, 0
          %v320 = vsel %vm319, 120.0, 0.0
          %v321 = vsub.f32 %v316, %v320
          %v322 = vld [vmem:[%s1] sm:$0x1f]
          %v323 = vmul.f32 %v321, 0.125
          %v324 = vmul.f32 %v322, %v323
          %vm325 = vcmask 258048
          %v326 = vsel %vm325, %v324, 0.0
          %v327 = vrot.slane %v326, 4
          %v328 = vadd.f32 %v326, %v327
          %v329 = vrot.slane %v328, 2
          %v330 = vadd.f32 %v328, %v329
          %v331 = vrot.slane %v330, 1
          %v332 = vadd.f32 %v330, %v331
          %v333 = vld [vmem:[%s2] sm:$0xff]
          %v334 = vld [vmem:[%s2 + $0x8] sm:$0xff]
          %v335 = vld [vmem:[%s2 + $0x10] sm:$0xff]
          %v336 = vld [vmem:[%s2 + $0x18] sm:$0xff]
          %v337 = vld [vmem:[%s3] sm:$0x1]
          %vm338 = vcmask 261120
          %v340 = vsel %vm338, %v332, 0
          %342 = vmatpush.msra.mxu0 0.0
          %343 = vmatpush.msra.mxu0 0.0
          %344 = vmatpush.msra.mxu0 0.0
          %345 = vmatpush.msra.mxu0 0.0
          %346 = vmatpush.msra.mxu0 0.0
          %347 = vmatpush.msra.mxu0 0.0
          %348 = vmatpush.msra.mxu0 0.0
          %349 = vmatpush.msra.mxu0 0.0
          %350 = vmatpush.msra.mxu0 0.0
          %351 = vmatpush.msra.mxu0 0.0
          %352 = vmatpush.msra.mxu0 0.0
          %353 = vmatpush.msra.mxu0 0.0
          %354 = vmatpush.msra.mxu0 %v336
          %355 = vmatpush.msra.mxu0 %v335
          %356 = vmatpush.msra.mxu0 %v334
          %357 = vmatpush.msra.mxu0 %v333
          %358 = vmatmul.f32.gmra.mxu0 %v340
          %v359 = vpop.f32.mrf.mxu0
          %v360 = vadd.f32 %v337, %v359
          %361 = vdwg.mxu0
          %vm362 = vcmask 8192
          %v363 = vsel %vm362, %v360, -inf
          %364 = vmax.xlane.f32.xlu0 %v363
          %v365 = vpop.xlane.xlu0 %364
          %v366 = vsub.f32 %v360, %v365
          %v367 = vmul.f32 %v366, 1.442695
          %v368 = vpow.pop %v367
          %v369 = vsel %vm362, %v368, 0.0
          %370 = vadd.xlane.f32.xlu0 %v369
          %v371 = vpop.xlane.xlu0 %370
          %v372 = vrcp.pop %v371
          %v373 = vmul.f32 %v371, %v372
          %v374 = vsub.f32 1.0, %v373
          %v375 = vmul.f32 %v372, %v374
          %v376 = vadd.f32 %v372, %v375
          %vm377 = vweird.f32 %v371
          %vm378 = vweird.f32 %v372
          %vm379 = vmor %vm377, %vm378
          %v380 = vsel %vm379, %v372, %v376
          %v381 = vand.u32 2147483647, %v371
          %vm382 = vcmp.eq.f32.partialorder %v381, 8.507059e+37
          %v383 = vand.u32 %v371, 2147483648
          %v384 = vor.u32 1.1754944e-38, %v383
          %v385 = vsel %vm382, %v384, %v380
          %v386 = vmul.f32 %v368, %v385
          %387 = vst.msk [vmem:[%s207] sm:$0x1] %vm362, %v386
        $region44: #{hf_forward_wrapper.1} parent=35 // pred_fallthru
          _
        %s388 = sand.u32 %s129, 1
        %s389 = scalar_lea.sflag [#allocation4], %s388
        %s390 = sand.u32 %s129, 1
        %s391 = scalar_lea.vmem [#allocation3], %s390
        // Predicated region
        $region45: #{hf_forward_wrapper.1} parent=35 // pred_check
          %p392 = pneg %p139
        $region46: #{hf_forward_wrapper.1} parent=35 // pred_check_branch
          %394 = sbr.rel (%p392) target = $region48
        $region47: #{hf_forward_wrapper.1} parent=35 // pred_region
          %396 = vsyncadd %s389, 0
          %s397 = scalar_lea.hbm %s4, %s22
          %s399 = sshll.u32 %s391, 4
          %s400 = int_to_ptr.vmem [resolvable:$true] %s399
          %s401 = sshll.u32 %s397, 4
          %s402 = int_to_ptr.hbm [resolvable:$true] %s401
          %404 = dma.vmem_to_hbm [thread:$0]  %s400, 16, %s402, %s389
        $region48: #{hf_forward_wrapper.1} parent=35 // pred_fallthru
          _
      $region36: #{hf_forward_wrapper.1} parent=5 // pred_fallthru
        _
      %p405 = scmp.le.s32.totalorder 2, %s13
      // Predicated region
      $region49: #{hf_forward_wrapper.1} parent=5 // pred_check
        %p406 = pneg %p405
      $region50: #{hf_forward_wrapper.1} parent=5 // pred_check_branch
        %408 = sbr.rel (%p406) target = $region52
      $region51: #{hf_forward_wrapper.1} parent=5 // pred_region
        %s409 = ssub.s32 %s13, 2
        // Predicated region
        $region53: #{hf_forward_wrapper.1} parent=51 // pred_check
          %p410 = pneg %p145
        $region54: #{hf_forward_wrapper.1} parent=51 // pred_check_branch
          %412 = sbr.rel (%p410) target = $region56
        $region55: #{hf_forward_wrapper.1} parent=51 // pred_region
          %s413 = sand.u32 %s130, 1
          %s414 = scalar_lea.sflag [#allocation4], %s413
          %s415 = sand.u32 %s130, 1
          %s416 = scalar_lea.vmem [#allocation3], %s415
          %418 = dma.done %s414, 16
        $region56: #{hf_forward_wrapper.1} parent=51 // pred_fallthru
          _
      $region52: #{hf_forward_wrapper.1} parent=5 // pred_fallthru
        _
    $region6: #{hf_forward_wrapper.1} parent=1 // loop_footer
      %s17 = sadd.s32 1, %s13
    $region7: #{hf_forward_wrapper.1} parent=1 // loop_footer_branch
      %12 = sbr.rel target = $region3
    $region8: #{hf_forward_wrapper.1} parent=1 // loop_exit
      _
    %419 = vsyncpa [#allocation4], 1
    %s420 = scalar_lea.sflag [#allocation4], 1
    %421 = vsyncpa %s420, 1

</llo_original>
